<compile_context>
chip_gen: v7x
topology: tpu7x:2x2x1
jax: 0.10.0
libtpu: 0.0.40
codegen_flags: <defaults>
</compile_context>

<pallas_src>
import jax
import jax.numpy as jnp
from jax import lax
from jax.experimental import pallas as pl
from jax.experimental.pallas import tpu as pltpu


def _betting_linear_kernel(x_ref, w_ref, b_ref, out_ref):
    # x_ref:   (tb, D) VMEM tile of the batch
    # w_ref:   (2, D)  VMEM, resident across the grid (row 0 = lin, row 1 = lin_q)
    # b_ref:   (2,)    SMEM bias scalars
    # out_ref: (2, tb) VMEM, lane-dense fused output (batch on lanes)
    acc = lax.dot_general(
        w_ref[...], x_ref[...],
        dimension_numbers=(((1,), (1,)), ((), ())),  # contract D with D -> (2, tb)
        preferred_element_type=jnp.float32,          # f32 accumulation (bf16-safe)
    )
    # Per-head bias add + lane-dense stores (one row per head).
    out_ref[0:1, :] = (acc[0:1, :] + b_ref[0]).astype(out_ref.dtype)
    out_ref[1:2, :] = (acc[1:2, :] + b_ref[1]).astype(out_ref.dtype)


def betting_linear_forward(x, w_lin, b_lin, w_lin_q, b_lin_q,
                           *, vmem_budget_bytes=10 * 1024 * 1024):
    """x: (B, D); w_*: (1, D); b_*: (1,). Returns {'y': (B, 1), 'yhat': (B, 1)}."""
    B, D = x.shape
    w = jnp.concatenate([w_lin, w_lin_q], axis=0)  # (2, D) — VMEM-resident
    b = jnp.concatenate([b_lin, b_lin_q], axis=0)  # (2,)  — SMEM scalars

    # ---- Padding-aware batch-tile sizing -------------------------------------
    # Per batch row held in VMEM:
    #   x double-buffer : 2 * round_up(D, 128) * itemsize   (lanes pad D -> 128)
    #   out double-buffer: (2, tb) block pads sublanes to 8 -> 2 * 8 * 4 bytes/lane
    # Keep the total inside the smallest default scoped VMEM (v5e 16 MiB,
    # v7x 32 MiB) with headroom for w (~8 KiB) and compiler scratch, so no
    # vmem_limit_bytes override is needed on any generation.
    itemsize = jnp.dtype(x.dtype).itemsize
    d_pad = ((D + 127) // 128) * 128
    per_row_bytes = 2 * d_pad * itemsize + 2 * 8 * 4
    tb = max(128, vmem_budget_bytes // per_row_bytes)
    tb = (tb // 128) * 128          # output lanes must be a multiple of 128 ...
    if B <= tb:
        tb = B                      # ... unless the block spans the full batch.
    grid = (pl.cdiv(B, tb),)

    out = pl.pallas_call(
        _betting_linear_kernel,
        out_shape=jax.ShapeDtypeStruct((2, B), x.dtype),
        grid=grid,
        in_specs=[
            pl.BlockSpec((tb, D), lambda i: (i, 0)),   # x: tiled over batch
            pl.BlockSpec((2, D), lambda i: (0, 0)),    # stacked weights: resident
            pl.BlockSpec(memory_space=pltpu.SMEM),     # biases: SMEM scalars
        ],
        out_specs=pl.BlockSpec((2, tb), lambda i: (0, i)),  # lane-dense fused output
        compiler_params=pltpu.CompilerParams(
            # Batch tiles are independent; enables pipelining and (for grid >= 2)
            # TensorCore sharding on v7x. No-op on single-TC v5e/v6e.
            dimension_semantics=("parallel",),
        ),
    )(x, w, b)

    y = out[0, :].reshape(B, 1)
    yhat = out[1, :].reshape(B, 1)
    return {"y": y, "yhat": yhat}


if __name__ == "__main__":
    num_weights = 33              # -> in_features = num_weights - 1 = 32
    in_features = num_weights - 1
    batch = 8

    key = jax.random.PRNGKey(0)
    kx, kw1, kb1, kw2, kb2 = jax.random.split(key, 5)

    # PyTorch-style uniform(-1/sqrt(D), 1/sqrt(D)) init for both linear layers.
    bound = 1.0 / jnp.sqrt(jnp.float32(in_features))
    w_lin = jax.random.uniform(kw1, (1, in_features), jnp.float32, -bound, bound)
    b_lin = jax.random.uniform(kb1, (1,), jnp.float32, -bound, bound)
    w_lin_q = jax.random.uniform(kw2, (1, in_features), jnp.float32, -bound, bound)
    b_lin_q = jax.random.uniform(kb2, (1,), jnp.float32, -bound, bound)

    x = jax.random.normal(kx, (batch, in_features), jnp.float32)

    out = betting_linear_forward(x, w_lin, b_lin, w_lin_q, b_lin_q)
    jax.block_until_ready(out["y"])
    jax.block_until_ready(out["yhat"])

    # Sanity-check against plain JAX reference.
    y_ref = x @ w_lin.T + b_lin
    yhat_ref = x @ w_lin_q.T + b_lin_q
    assert jnp.allclose(out["y"], y_ref, atol=1e-5, rtol=1e-5), "y mismatch vs reference"
    assert jnp.allclose(out["yhat"], yhat_ref, atol=1e-5, rtol=1e-5), "yhat mismatch vs reference"

    print("KERNEL_OK")
</pallas_src>

<mosaic_0001>
module attributes {stable_mosaic.version = 11 : i64} {
  func.func @_betting_linear_kernel(%arg0: i32, %arg1: memref<8x32xf32, #tpu.memory_space<vmem>>, %arg2: memref<2x32xf32, #tpu.memory_space<vmem>>, %arg3: memref<2xf32, #tpu.memory_space<smem>>, %arg4: memref<2x8xf32, #tpu.memory_space<vmem>>) attributes {dimension_semantics = [#tpu.dimension_semantics<parallel>], iteration_bounds = array<i64: 1>, scalar_prefetch = 0 : i64, scratch_operands = 0 : i64, tpu.core_type = #tpu.core_type<tc>, window_params = [{transform_indices = @transform_0, window_bounds = array<i64: 8, 32>}, {pipeline_mode = #tpu.pipeline_mode<synchronous>, transform_indices = @transform_1, window_bounds = array<i64: 2, 32>}, {transform_indices = @transform_2, window_bounds = array<i64: 2>}, {transform_indices = @transform_3, window_bounds = array<i64: 2, 8>}]} {
    %c0 = arith.constant 0 : index
    %c0_0 = arith.constant 0 : index
    %0 = vector.load %arg2[%c0, %c0_0] : memref<2x32xf32, #tpu.memory_space<vmem>>, vector<2x32xf32>
    %c0_1 = arith.constant 0 : index
    %c0_2 = arith.constant 0 : index
    %1 = vector.load %arg1[%c0_1, %c0_2] : memref<8x32xf32, #tpu.memory_space<vmem>>, vector<8x32xf32>
    %cst = arith.constant dense<0.000000e+00> : vector<2x8xf32>
    %2 = tpu.matmul %0, %1, %cst {dimension_numbers = #tpu.dot_dimension_numbers<[1], [1], [0], [0], [0, 0, 1, 0], [], []>} : vector<2x32xf32>, vector<8x32xf32>, vector<2x8xf32> -> vector<2x8xf32>
    %3 = vector.extract_strided_slice %2 {offsets = [0, 0], sizes = [1, 8], strides = [1, 1]} : vector<2x8xf32> to vector<1x8xf32>
    %c0_3 = arith.constant 0 : index
    %4 = memref.load %arg3[%c0_3] : memref<2xf32, #tpu.memory_space<smem>>
    %5 = vector.broadcast %4 : f32 to vector<1x8xf32>
    %6 = arith.addf %3, %5 : vector<1x8xf32>
    %c0_4 = arith.constant 0 : index
    %c0_5 = arith.constant 0 : index
    %7 = vector.load %arg4[%c0_4, %c0_5] : memref<2x8xf32, #tpu.memory_space<vmem>>, vector<1x8xf32>
    tpu.vector_store %arg4[%c0_4, %c0_5], %6 {strides = array<i32>} : memref<2x8xf32, #tpu.memory_space<vmem>>, vector<1x8xf32>,
    %8 = vector.extract_strided_slice %2 {offsets = [1, 0], sizes = [1, 8], strides = [1, 1]} : vector<2x8xf32> to vector<1x8xf32>
    %c1 = arith.constant 1 : index
    %9 = memref.load %arg3[%c1] : memref<2xf32, #tpu.memory_space<smem>>
    %10 = vector.broadcast %9 : f32 to vector<1x8xf32>
    %11 = arith.addf %8, %10 : vector<1x8xf32>
    %c1_6 = arith.constant 1 : index
    %c0_7 = arith.constant 0 : index
    %12 = vector.load %arg4[%c1_6, %c0_7] : memref<2x8xf32, #tpu.memory_space<vmem>>, vector<1x8xf32>
    tpu.vector_store %arg4[%c1_6, %c0_7], %11 {strides = array<i32>} : memref<2x8xf32, #tpu.memory_space<vmem>>, vector<1x8xf32>,
    return
  }
  func.func @transform_0(%arg0: i32) -> (i32, i32) {
    %c0_i32 = arith.constant 0 : i32
    %c0_i32_0 = arith.constant 0 : i32
    return %arg0, %c0_i32 : i32, i32
  }
  func.func @transform_1(%arg0: i32) -> (i32, i32) {
    %c0_i32 = arith.constant 0 : i32
    %c0_i32_0 = arith.constant 0 : i32
    %c0_i32_1 = arith.constant 0 : i32
    return %c0_i32, %c0_i32_0 : i32, i32
  }
  func.func @transform_2(%arg0: i32) -> i32 {
    %c0_i32 = arith.constant 0 : i32
    %c0_i32_0 = arith.constant 0 : i32
    return %c0_i32 : i32
  }
  func.func @transform_3(%arg0: i32) -> (i32, i32) {
    %c0_i32 = arith.constant 0 : i32
    %c0_i32_0 = arith.constant 0 : i32
    return %c0_i32, %arg0 : i32, i32
  }
}

</mosaic_0001>

<llo_original>
// kernel: tpu_custom_call.1
$region0: #{tpu_custom_call.1}
  #allocation0 [shape = 'u32[]', space=smem, size = 0x4, offset = 0x4, fixed_abs, tag = 'smem constant byte address 0x4 - core index']
  #allocation1 [shape = 'u32[144,128]{1,0:T(1,128)}', space=vmem, size = 0x12000, scoped, tag = 'internal scratch']
  %s0 = inlined_call_operand.hbm [shape: f32[8,32], index: 0, kind: input, shape index: {}]
  %s1 = inlined_call_operand.vmem [shape: f32[2,32], index: 1, kind: input, shape index: {}]
  %s2 = inlined_call_operand.vmem [shape: f32[2], index: 2, kind: input, shape index: {}]
  %s3 = inlined_call_operand.hbm [shape: f32[2,8], index: 3, kind: output, shape index: {}]
  %s4 = sld [smem:[#allocation0]]
  $region30: #{tpu_custom_call.1} parent=0
    _
  %s6 = ssub.s32 1, %s4
  %s7 = scalar_select 0, %s6, %s4
  $region1: #{tpu_custom_call.1} parent=0
    #allocation2 [shape = 'u8[4096]{0}', space=vmem, size = 0x1000, scoped, tag = 'input window, operand 0, single buffered']
    #allocation3 [shape = 's32[1]{0}', space=sflag, size = 0x4, scoped, tag = 'scoped memory for tpu_custom_call.1']
    #allocation4 [shape = 's32[1]{0}', space=sflag, size = 0x4, scoped, tag = 'scoped memory for tpu_custom_call.1']
    #allocation5 [shape = 's32[1]{0}', space=sflag, size = 0x4, scoped, tag = 'scoped memory for tpu_custom_call.1']
    #allocation6 [shape = 'u8[512]{0}', space=smem, size = 0x200, scoped, tag = 'input window, operand 2, single buffered']
    #allocation7 [shape = 'u8[1024]{0}', space=vmem, size = 0x400, scoped, tag = 'output window, operand 0, single buffered']
    %8 = vsyncpa [#allocation3], 0
    %9 = vsyncpa [#allocation5], 0
    %10 = vsyncpa [#allocation4], 0
    // Predicated region
    $region2: #{tpu_custom_call.1} parent=1 // pred_check
      _
    $region3: #{tpu_custom_call.1} parent=1 // pred_check_branch
      %12 = sbr.rel (0) target = $region5
    $region4: #{tpu_custom_call.1} parent=1 // pred_region
      %s14 = ssub.s32 128, 128
      %15 = vsyncadd [#allocation3], %s14
      %s17 = sshll.u32 [#allocation2], 4
      %s18 = int_to_ptr.vmem [resolvable:$true] %s17
      %20 = dma.hbm_to_vmem [thread:$0]  %s0, 128, %s18, [#allocation3]
    $region5: #{tpu_custom_call.1} parent=1 // pred_fallthru
      _
    // Predicated region
    $region6: #{tpu_custom_call.1} parent=1 // pred_check
      _
    $region7: #{tpu_custom_call.1} parent=1 // pred_check_branch
      %22 = sbr.rel (0) target = $region9
    $region8: #{tpu_custom_call.1} parent=1 // pred_region
      _
    $region9: #{tpu_custom_call.1} parent=1 // pred_fallthru
      _
    // Predicated region
    $region10: #{tpu_custom_call.1} parent=1 // pred_check
      _
    $region11: #{tpu_custom_call.1} parent=1 // pred_check_branch
      %24 = sbr.rel (0) target = $region13
    $region12: #{tpu_custom_call.1} parent=1 // pred_region
      %s26 = ssub.s32 16, 16
      %27 = vsyncadd [#allocation5], %s26
      %s29 = sshll.u32 %s2, 4
      %s30 = int_to_ptr.vmem [resolvable:$true] %s29
      %32 = dma.vmem_to_smem %s30, 16, [#allocation6], [#allocation5]
    $region13: #{tpu_custom_call.1} parent=1 // pred_fallthru
      _
    // Predicated region
    $region14: #{tpu_custom_call.1} parent=1 // pred_check
      _
    $region15: #{tpu_custom_call.1} parent=1 // pred_check_branch
      %34 = sbr.rel (0) target = $region17
    $region16: #{tpu_custom_call.1} parent=1 // pred_region
      %35 = dma.done [#allocation3], 128
    $region17: #{tpu_custom_call.1} parent=1 // pred_fallthru
      _
    // Predicated region
    $region18: #{tpu_custom_call.1} parent=1 // pred_check
      _
    $region19: #{tpu_custom_call.1} parent=1 // pred_check_branch
      %37 = sbr.rel (0) target = $region21
    $region20: #{tpu_custom_call.1} parent=1 // pred_region
      %38 = dma.done [#allocation5], 16
    $region21: #{tpu_custom_call.1} parent=1 // pred_fallthru
      _
    %39 = sfence
    %v40 = vld [vmem:[%s1] sm:$0x3]
    %v41 = vld [vmem:[#allocation2] sm:$0xff]
    %vm42 = vcmask 261120
    %v44 = vsel %vm42, %v40, 0
    %v47 = vsel %vm42, %v41, 0
    %49 = vmatprep.subr.mxu0 0.0
    %50 = vmatpush1.xpose.msra.mxu0 %v47
    %51 = vmatprep.subr.mxu0 0.0
    %52 = vmatpush1.xpose.msra.mxu0 0.0
    %53 = vmatprep.subr.mxu0 0.0
    %54 = vmatpush1.xpose.msra.mxu0 0.0
    %55 = vmatprep.subr.mxu0 0.0
    %56 = vmatpush1.xpose.msra.mxu0 0.0
    %57 = vmatprep.subr.mxu0 0.0
    %58 = vmatpush1.xpose.msra.mxu0 0.0
    %59 = vmatprep.subr.mxu0 0.0
    %60 = vmatpush1.xpose.msra.mxu0 0.0
    %61 = vmatprep.subr.mxu0 0.0
    %62 = vmatpush1.xpose.msra.mxu0 0.0
    %63 = vmatprep.subr.mxu0 0.0
    %64 = vmatpush1.xpose.msra.mxu0 0.0
    %65 = vmatprep.subr.mxu0 0.0
    %66 = vmatpush1.xpose.msra.mxu0 0.0
    %67 = vmatprep.subr.mxu0 0.0
    %68 = vmatpush1.xpose.msra.mxu0 0.0
    %69 = vmatprep.subr.mxu0 0.0
    %70 = vmatpush1.xpose.msra.mxu0 0.0
    %71 = vmatprep.subr.mxu0 0.0
    %72 = vmatpush1.xpose.msra.mxu0 0.0
    %73 = vmatprep.subr.mxu0 0.0
    %74 = vmatpush1.xpose.msra.mxu0 0.0
    %75 = vmatprep.subr.mxu0 0.0
    %76 = vmatpush1.xpose.msra.mxu0 0.0
    %77 = vmatprep.subr.mxu0 0.0
    %78 = vmatpush1.xpose.msra.mxu0 0.0
    %79 = vmatprep.subr.mxu0 0.0
    %80 = vmatpush1.xpose.msra.mxu0 0.0
    %81 = vmatprep.subr.mxu0 0.0
    %82 = vmatpush1.xpose.msra.mxu0 0.0
    %83 = vmatprep.subr.mxu0 0.0
    %84 = vmatpush1.xpose.msra.mxu0 0.0
    %85 = vmatprep.subr.mxu0 0.0
    %86 = vmatpush1.xpose.msra.mxu0 0.0
    %87 = vmatprep.subr.mxu0 0.0
    %88 = vmatpush1.xpose.msra.mxu0 0.0
    %89 = vmatprep.subr.mxu0 0.0
    %90 = vmatpush1.xpose.msra.mxu0 0.0
    %91 = vmatprep.subr.mxu0 0.0
    %92 = vmatpush1.xpose.msra.mxu0 0.0
    %93 = vmatprep.subr.mxu0 0.0
    %94 = vmatpush1.xpose.msra.mxu0 0.0
    %95 = vmatprep.subr.mxu0 0.0
    %96 = vmatpush1.xpose.msra.mxu0 0.0
    %97 = vmatprep.subr.mxu0 0.0
    %98 = vmatpush1.xpose.msra.mxu0 0.0
    %99 = vmatprep.subr.mxu0 0.0
    %100 = vmatpush1.xpose.msra.mxu0 0.0
    %101 = vmatprep.subr.mxu0 0.0
    %102 = vmatpush1.xpose.msra.mxu0 0.0
    %103 = vmatprep.subr.mxu0 0.0
    %104 = vmatpush1.xpose.msra.mxu0 0.0
    %105 = vmatprep.subr.mxu0 0.0
    %106 = vmatpush1.xpose.msra.mxu0 0.0
    %107 = vmatprep.subr.mxu0 0.0
    %108 = vmatpush1.xpose.msra.mxu0 0.0
    %109 = vmatprep.subr.mxu0 0.0
    %110 = vmatpush1.xpose.msra.mxu0 0.0
    %111 = vmatprep.subr.mxu0 0.0
    %112 = vmatpush1.xpose.msra.mxu0 0.0
    %113 = vmatprep.mubr.f32.mxu0 0.0
    %114 = vmatmul.mubr.f32.gmra.mrb[0].mxu0 %v44
    %v115 = vpop.f32.mrb[0].mxu0
    %v116 = vadd.f32 0.0, %v115
    %v117 = vpop.f32.mrb[0].mxu0
    %118 = vdwg.mxu0
    %s119 = sld [smem:[#allocation6]]
    %v120 = vstv %s119
    %v121 = vadd.f32 %v116, %v120
    %vm122 = vcmask 57344
    %123 = vst.msk [vmem:[#allocation7] sm:$0x1] %vm122, %v121
    %s124 = sld [smem:[#allocation6 + $0x1]]
    %v125 = vstv %s124
    %v126 = vadd.f32 %v116, %v125
    %vm127 = vcmask 58369
    %128 = vst.msk [vmem:[#allocation7] sm:$0x2] %vm127, %v126
    // Predicated region
    $region22: #{tpu_custom_call.1} parent=1 // pred_check
      _
    $region23: #{tpu_custom_call.1} parent=1 // pred_check_branch
      %130 = sbr.rel (0) target = $region25
    $region24: #{tpu_custom_call.1} parent=1 // pred_region
      %s132 = ssub.s32 32, 32
      %133 = vsyncadd [#allocation4], %s132
      %s135 = sshll.u32 [#allocation7], 4
      %s136 = int_to_ptr.vmem [resolvable:$true] %s135
      %138 = dma.vmem_to_hbm [thread:$0]  %s136, 32, %s3, [#allocation4]
    $region25: #{tpu_custom_call.1} parent=1 // pred_fallthru
      _
    // Predicated region
    $region26: #{tpu_custom_call.1} parent=1 // pred_check
      _
    $region27: #{tpu_custom_call.1} parent=1 // pred_check_branch
      %140 = sbr.rel (0) target = $region29
    $region28: #{tpu_custom_call.1} parent=1 // pred_region
      %141 = dma.done [#allocation4], 32
    $region29: #{tpu_custom_call.1} parent=1 // pred_fallthru
      _
    %142 = vsyncpa [#allocation3], 1
    %143 = vsyncpa [#allocation4], 1
    %144 = vsyncpa [#allocation5], 1

</llo_original>
